<compile_context>
chip_gen: v6e
topology: v6e:2x2x1
jax: 0.10.0
libtpu: 0.0.40
codegen_flags: <defaults>
</compile_context>

<pallas_src>
import functools

import jax
import jax.numpy as jnp
from jax.experimental import pallas as pl
from jax.experimental.pallas import tpu as pltpu

_MiB = 1024 * 1024


def _clamp_kernel(x_ref, o_ref, *, min_val, max_val):
    x = x_ref[...]
    if min_val is not None:
        x = jnp.maximum(x, min_val)
    if max_val is not None:
        x = jnp.minimum(x, max_val)
    # Bounds are pre-coerced to x.dtype; astype is a no-op safety net.
    o_ref[...] = x.astype(o_ref.dtype)


def _default_block_bytes():
    """~6 MiB on v7x (amortize per-step overhead at 3.2 TB/s/TC), 2 MiB else."""
    try:
        kind = jax.devices()[0].device_kind.lower()
    except Exception:
        return 2 * _MiB
    if "v7" in kind or "7x" in kind:
        return 6 * _MiB
    return 2 * _MiB


def _vmem_limit(block_bytes):
    # 2 double-buffered input blocks + 2 output blocks + DMA/scratch headroom.
    return int(min(48 * _MiB, max(16 * _MiB, 4 * block_bytes + 8 * _MiB)))


def _launch(slab, block_shape, grid, index_map, *, min_val, max_val,
            vmem_limit_bytes):
    kernel = functools.partial(_clamp_kernel, min_val=min_val, max_val=max_val)
    return pl.pallas_call(
        kernel,
        out_shape=jax.ShapeDtypeStruct(slab.shape, slab.dtype),
        grid_spec=pltpu.PrefetchScalarGridSpec(
            num_scalar_prefetch=0,
            grid=grid,
            in_specs=[pl.BlockSpec(block_shape, index_map)],
            out_specs=pl.BlockSpec(block_shape, index_map),
        ),
        compiler_params=pltpu.CompilerParams(
            # Lets v7x shard the streaming grid across its 2 TensorCores;
            # neutral on the single-TC v5e/v6e.
            dimension_semantics=("parallel",),
            vmem_limit_bytes=vmem_limit_bytes,
        ),
    )(slab)


def clamp_pallas(x, min_val=-1.0, max_val=1.0, *, target_block_bytes=None):
    """Elementwise clamp of x (any shape) to [min_val, max_val] on TPU."""
    orig_shape = x.shape
    dtype = x.dtype
    n = x.size
    if n == 0:
        return x
    if target_block_bytes is None:
        target_block_bytes = _default_block_bytes()

    # Coerce bounds to x.dtype up front so the kernel math stays in-dtype.
    np_dtype = jnp.dtype(dtype)
    if min_val is not None:
        min_val = np_dtype.type(min_val)
    if max_val is not None:
        max_val = np_dtype.type(max_val)
    # TODO(synk): integer inputs with fractional float bounds truncate the
    # bound toward zero here; torch.clamp's promotion for that corner differs.

    lane = 128
    itemsize = np_dtype.itemsize
    # Sub-32-bit dtypes pack along sublanes: 8 rows f32, 16 bf16, 32 int8/fp8.
    sublane = {4: 8, 2: 16, 1: 32}.get(itemsize, 8)
    base = sublane * lane  # smallest copy-free (rows x lanes) flattening unit
    slab_bytes = n * itemsize

    x_flat = x.reshape(-1)

    if n % base == 0:
        # ---- Aligned fast path: zero-copy reshape to lane-dense (R, W). ----
        W = lane
        for cand in (2048, 1024, 512, 256):
            if n % cand == 0 and (n // cand) % sublane == 0:
                W = cand
                break
        R = n // W
        row_bytes = W * itemsize

        block_rows = max(sublane, target_block_bytes // row_bytes)
        block_rows = (block_rows // sublane) * sublane
        # Keep >= 2 grid steps for non-trivial slabs so both v7x TCs stream.
        if slab_bytes >= 4 * _MiB:
            half_rows = ((R // 2) // sublane) * sublane
            if half_rows >= sublane:
                block_rows = min(block_rows, half_rows)
        block_rows = min(block_rows, R)

        grid = (pl.cdiv(R, block_rows),)
        out = _launch(
            x_flat.reshape(R, W), (block_rows, W), grid, lambda i: (i, 0),
            min_val=min_val, max_val=max_val,
            vmem_limit_bytes=_vmem_limit(block_rows * row_bytes))
        return out.reshape(orig_shape)

    # ---- Ragged path: (1, n) slab, lane-tiled blocks, edge-masked tail. ----
    # No jnp.pad / out[:n]: the unpadded flat array is the pallas operand and
    # the final partial block is masked by Pallas, so wrapper-side extra HBM
    # traffic is zero.  (1, BL) blocks are sublane-sparse in vregs but the
    # DMAs stay large and contiguous, and the kernel is DMA-bound.
    BL = max(lane, (target_block_bytes // itemsize) // lane * lane)
    if slab_bytes >= 4 * _MiB:
        half_cols = pl.cdiv(pl.cdiv(n, 2), lane) * lane
        BL = min(BL, max(lane, half_cols))
    BL = min(BL, pl.cdiv(n, lane) * lane)
    grid = (pl.cdiv(n, BL),)
    out = _launch(
        x_flat.reshape(1, n), (1, BL), grid, lambda i: (0, i),
        min_val=min_val, max_val=max_val,
        vmem_limit_bytes=_vmem_limit(BL * itemsize))
    return out.reshape(orig_shape)


if __name__ == "__main__":
    key = jax.random.PRNGKey(0)
    # NCHW input, scaled so values fall both inside and outside [-1, 1]
    x = jax.random.normal(key, (2, 4, 16, 16), dtype=jnp.float32) * 2.0

    min_val, max_val = -1.0, 1.0
    out = clamp_pallas(x, min_val, max_val)
    out = jax.block_until_ready(out)

    ref = jnp.clip(x, min_val, max_val)
    assert out.shape == x.shape and out.dtype == x.dtype
    assert jnp.allclose(out, ref), "mismatch vs reference clamp"
    print("KERNEL_OK")
</pallas_src>

<mosaic_0001>
module attributes {stable_mosaic.version = 11 : i64} {
  func.func @_clamp_kernel(%arg0: i32, %arg1: memref<8x256xf32, #tpu.memory_space<vmem>>, %arg2: memref<8x256xf32, #tpu.memory_space<vmem>>) attributes {dimension_semantics = [#tpu.dimension_semantics<parallel>], iteration_bounds = array<i64: 1>, scalar_prefetch = 0 : i64, scratch_operands = 0 : i64, tpu.core_type = #tpu.core_type<tc>, window_params = [{transform_indices = @transform_0, window_bounds = array<i64: 8, 256>}, {transform_indices = @transform_1, window_bounds = array<i64: 8, 256>}]} {
    %c0 = arith.constant 0 : index
    %c0_0 = arith.constant 0 : index
    %0 = vector.load %arg1[%c0, %c0_0] : memref<8x256xf32, #tpu.memory_space<vmem>>, vector<8x256xf32>
    %cst = arith.constant -1.000000e+00 : f32
    %1 = vector.broadcast %cst : f32 to vector<8x256xf32>
    %2 = arith.maximumf %0, %1 : vector<8x256xf32>
    %cst_1 = arith.constant 1.000000e+00 : f32
    %3 = vector.broadcast %cst_1 : f32 to vector<8x256xf32>
    %4 = arith.minimumf %2, %3 : vector<8x256xf32>
    %c0_2 = arith.constant 0 : index
    %c0_3 = arith.constant 0 : index
    %5 = vector.load %arg2[%c0_2, %c0_3] : memref<8x256xf32, #tpu.memory_space<vmem>>, vector<8x256xf32>
    tpu.vector_store %arg2[%c0_2, %c0_3], %4 {strides = array<i32>} : memref<8x256xf32, #tpu.memory_space<vmem>>, vector<8x256xf32>,
    return
  }
  func.func @transform_0(%arg0: i32) -> (i32, i32) {
    %c0_i32 = arith.constant 0 : i32
    %c0_i32_0 = arith.constant 0 : i32
    return %arg0, %c0_i32 : i32, i32
  }
  func.func @transform_1(%arg0: i32) -> (i32, i32) {
    %c0_i32 = arith.constant 0 : i32
    %c0_i32_0 = arith.constant 0 : i32
    return %arg0, %c0_i32 : i32, i32
  }
}

</mosaic_0001>

<llo_original>
// kernel: tpu_custom_call.1
$region0: #{tpu_custom_call.1}
  #allocation0 [shape = 'u32[]', space=smem, size = 0x4, offset = 0x4, fixed_abs, tag = 'smem constant byte address 0x4 - core index']
  #allocation1 [shape = 'u32[144,128]{1,0:T(1,128)}', space=vmem, size = 0x12000, scoped, tag = 'internal scratch']
  %s0 = inlined_call_operand.hbm [shape: f32[8,256], index: 0, kind: input, shape index: {}]
  %s1 = inlined_call_operand.hbm [shape: f32[8,256], index: 1, kind: output, shape index: {}]
  %s2 = sld [smem:[#allocation0]]
  $region18: #{tpu_custom_call.1} parent=0
    _
  %s4 = ssub.s32 1, %s2
  %s5 = scalar_select 0, %s4, %s2
  $region1: #{tpu_custom_call.1} parent=0
    #allocation2 [shape = 'u8[8192]{0}', space=vmem, size = 0x2000, scoped, tag = 'input window, operand 0, single buffered']
    #allocation3 [shape = 's32[1]{0}', space=sflag, size = 0x4, scoped, tag = 'scoped memory for tpu_custom_call.1']
    #allocation4 [shape = 's32[1]{0}', space=sflag, size = 0x4, scoped, tag = 'scoped memory for tpu_custom_call.1']
    #allocation5 [shape = 'u8[8192]{0}', space=vmem, size = 0x2000, scoped, tag = 'output window, operand 0, single buffered']
    %6 = vsyncpa [#allocation3], 0
    %7 = vsyncpa [#allocation4], 0
    // Predicated region
    $region2: #{tpu_custom_call.1} parent=1 // pred_check
      _
    $region3: #{tpu_custom_call.1} parent=1 // pred_check_branch
      %9 = sbr.rel (0) target = $region5
    $region4: #{tpu_custom_call.1} parent=1 // pred_region
      %s11 = ssub.s32 256, 256
      %12 = vsyncadd [#allocation3], %s11
      %s14 = sshll.u32 [#allocation2], 4
      %s15 = int_to_ptr.vmem [resolvable:$true] %s14
      %17 = dma.hbm_to_vmem [thread:$0]  %s0, 256, %s15, [#allocation3]
    $region5: #{tpu_custom_call.1} parent=1 // pred_fallthru
      _
    // Predicated region
    $region6: #{tpu_custom_call.1} parent=1 // pred_check
      _
    $region7: #{tpu_custom_call.1} parent=1 // pred_check_branch
      %19 = sbr.rel (0) target = $region9
    $region8: #{tpu_custom_call.1} parent=1 // pred_region
      %20 = dma.done [#allocation3], 256
    $region9: #{tpu_custom_call.1} parent=1 // pred_fallthru
      _
    %v21 = vld [vmem:[#allocation2] sm:$0xff]
    %v22 = vld [vmem:[#allocation2 + $0x8] sm:$0xff]
    %v23 = vmax.f32 %v21, -1.0
    %v24 = vmax.f32 %v22, -1.0
    %v25 = vmin.f32 %v23, 1.0
    %v26 = vmin.f32 %v24, 1.0
    %27 = vst [vmem:[#allocation5] sm:$0xff] %v25
    %28 = vst [vmem:[#allocation5 + $0x8] sm:$0xff] %v26
    // Predicated region
    $region10: #{tpu_custom_call.1} parent=1 // pred_check
      _
    $region11: #{tpu_custom_call.1} parent=1 // pred_check_branch
      %30 = sbr.rel (0) target = $region13
    $region12: #{tpu_custom_call.1} parent=1 // pred_region
      %s32 = ssub.s32 256, 256
      %33 = vsyncadd [#allocation4], %s32
      %s35 = sshll.u32 [#allocation5], 4
      %s36 = int_to_ptr.vmem [resolvable:$true] %s35
      %38 = dma.vmem_to_hbm [thread:$0]  %s36, 256, %s1, [#allocation4]
    $region13: #{tpu_custom_call.1} parent=1 // pred_fallthru
      _
    // Predicated region
    $region14: #{tpu_custom_call.1} parent=1 // pred_check
      _
    $region15: #{tpu_custom_call.1} parent=1 // pred_check_branch
      %40 = sbr.rel (0) target = $region17
    $region16: #{tpu_custom_call.1} parent=1 // pred_region
      %41 = dma.done [#allocation4], 256
    $region17: #{tpu_custom_call.1} parent=1 // pred_fallthru
      _
    %42 = vsyncpa [#allocation3], 1
    %43 = vsyncpa [#allocation4], 1

</llo_original>
